<compile_context>
chip_gen: v5e
topology: v5e:2x2
jax: 0.10.0
libtpu: 0.0.40
codegen_flags: <defaults>
</compile_context>

<pallas_src>
import jax
import jax.numpy as jnp
from jax.experimental import pallas as pl
from jax.experimental.pallas import tpu as pltpu

IN_DIM = 128
H_DIM = 128
OUT_DIM = 16


def _round_up(x, m):
    return ((x + m - 1) // m) * m


def _pick_tile_b(b):
    """Batch-tile selection.

    Small batches: one padded tile (16-row aligned) -> single grid step.
    Large batches: 512-1024-row tiles and >=2 grid steps so the "parallel"
    axis can be sharded across both TensorCores on v7x.  A 1024-row tile's
    working set (x 512 KiB f32, h 1 MiB f32, out 32 KiB bf16, double-buffered
    I/O) stays well inside every generation's scoped-VMEM default.
    """
    bp = _round_up(max(b, 1), 16)
    if bp <= 512:
        return bp
    return min(1024, _round_up((bp + 1) // 2, 16))


def dqn_mlp_kernel(x_ref,
                   w1_ref, b1_ref,
                   w2_ref, b2_ref,
                   w3_ref, b3_ref,
                   w4_ref, b4_ref,
                   o_ref):
    # Cast f32 input to bf16 in-kernel (avoids a separate wrapper-side cast
    # pass over HBM).  All dots accumulate in f32; bias-add / ReLU in f32.
    x = x_ref[...].astype(jnp.bfloat16)
    # Layer 1: Linear + ReLU
    h = jnp.dot(x, w1_ref[...], preferred_element_type=jnp.float32)
    h = jnp.maximum(h + b1_ref[...], 0.0)
    # Layer 2: Linear + ReLU
    h = jnp.dot(h.astype(jnp.bfloat16), w2_ref[...],
                preferred_element_type=jnp.float32)
    h = jnp.maximum(h + b2_ref[...], 0.0)
    # Layer 3: Linear + ReLU (h_dim -> 2*h_dim)
    h = jnp.dot(h.astype(jnp.bfloat16), w3_ref[...],
                preferred_element_type=jnp.float32)
    h = jnp.maximum(h + b3_ref[...], 0.0)
    # Layer 4: Linear (2*h_dim -> out_dim), stored as bf16 (halves writeback).
    out = jnp.dot(h.astype(jnp.bfloat16), w4_ref[...],
                  preferred_element_type=jnp.float32)
    o_ref[...] = (out + b4_ref[...]).astype(o_ref.dtype)


def prepare_params(params):
    """Cast weights to bf16 (MXU-fast); keep biases f32."""
    return dict(
        w1=params["w1"].astype(jnp.bfloat16), b1=params["b1"],
        w2=params["w2"].astype(jnp.bfloat16), b2=params["b2"],
        w3=params["w3"].astype(jnp.bfloat16), b3=params["b3"],
        w4=params["w4"].astype(jnp.bfloat16), b4=params["b4"],
    )


def dqn_forward(state, p):
    """state: (B, IN_DIM) float32; p: prepare_params(...) output -> (B, 16) f32."""
    if state is None:          # mirror PyTorch forward's None guard
        return 0.0
    B = state.shape[0]
    tile_b = _pick_tile_b(B)
    n_tiles = pl.cdiv(B, tile_b)
    Bp = n_tiles * tile_b

    x = state
    if Bp != B:
        x = jnp.pad(x, ((0, Bp - B), (0, 0)))

    const = lambda i: (0, 0)   # weights/biases: one VMEM-resident block
    # NOTE: constant index_map already prevents per-step re-DMA of the weights;
    # single-buffering them (pipeline_mode=pl.Buffered(1)) would only save a
    # couple hundred KiB of VMEM, so it is intentionally left at the default.
    in_specs = [
        pl.BlockSpec((tile_b, IN_DIM), lambda i: (i, 0)),          # x tile (f32)
        pl.BlockSpec((IN_DIM, H_DIM), const),                      # w1
        pl.BlockSpec((1, H_DIM), const),                           # b1
        pl.BlockSpec((H_DIM, H_DIM), const),                       # w2
        pl.BlockSpec((1, H_DIM), const),                           # b2
        pl.BlockSpec((H_DIM, 2 * H_DIM), const),                   # w3
        pl.BlockSpec((1, 2 * H_DIM), const),                       # b3
        pl.BlockSpec((2 * H_DIM, OUT_DIM), const),                 # w4
        pl.BlockSpec((1, OUT_DIM), const),                         # b4
    ]
    out_spec = pl.BlockSpec((tile_b, OUT_DIM), lambda i: (i, 0))

    flops = 2 * Bp * (IN_DIM * H_DIM + H_DIM * H_DIM
                      + H_DIM * 2 * H_DIM + 2 * H_DIM * OUT_DIM)
    weight_bytes = 2 * (IN_DIM * H_DIM + H_DIM * H_DIM
                        + H_DIM * 2 * H_DIM + 2 * H_DIM * OUT_DIM)   # bf16
    bias_bytes = 4 * (H_DIM + H_DIM + 2 * H_DIM + OUT_DIM)           # f32
    bytes_accessed = (Bp * IN_DIM * 4        # f32 input
                      + weight_bytes + bias_bytes
                      + Bp * OUT_DIM * 2)    # bf16 output

    out = pl.pallas_call(
        dqn_mlp_kernel,
        out_shape=jax.ShapeDtypeStruct((Bp, OUT_DIM), jnp.bfloat16),
        grid=(n_tiles,),
        in_specs=in_specs,
        out_specs=out_spec,
        compiler_params=pltpu.CompilerParams(
            dimension_semantics=("parallel",)),
        cost_estimate=pl.CostEstimate(
            flops=flops, transcendentals=0, bytes_accessed=bytes_accessed),
    )(x, p["w1"], p["b1"], p["w2"], p["b2"], p["w3"], p["b3"], p["w4"], p["b4"])

    # Slice off batch padding and upcast to f32 (tiny: B x 16).
    return out[:B].astype(jnp.float32)


def init_params(key):
    """Deterministic synthetic init (PyTorch-Linear-like uniform scaling), f32."""
    dims = [(IN_DIM, H_DIM), (H_DIM, H_DIM), (H_DIM, 2 * H_DIM), (2 * H_DIM, OUT_DIM)]
    params = {}
    keys = jax.random.split(key, 2 * len(dims))
    for i, (fan_in, fan_out) in enumerate(dims):
        bound = 1.0 / jnp.sqrt(fan_in)
        params[f"w{i+1}"] = jax.random.uniform(
            keys[2 * i], (fan_in, fan_out), jnp.float32, -bound, bound)
        params[f"b{i+1}"] = jax.random.uniform(
            keys[2 * i + 1], (1, fan_out), jnp.float32, -bound, bound)
    return params


def reference_forward(state, p):
    """Pure-JAX reference with the same bf16-weight / f32-accumulate recipe."""
    def lin(x, w, b):
        return jnp.dot(x.astype(jnp.bfloat16), w.astype(jnp.bfloat16),
                       preferred_element_type=jnp.float32) + b
    h = jnp.maximum(lin(state, p["w1"], p["b1"]), 0.0)
    h = jnp.maximum(lin(h, p["w2"], p["b2"]), 0.0)
    h = jnp.maximum(lin(h, p["w3"], p["b3"]), 0.0)
    return lin(h, p["w4"], p["b4"])


if __name__ == "__main__":
    key = jax.random.PRNGKey(0)
    pkey, xkey = jax.random.split(key)
    params = init_params(pkey)
    prepared = prepare_params(params)

    batch = 8  # small acting-time batch; wrapper pads to a 16-row tile
    state = jax.random.normal(xkey, (batch, IN_DIM), jnp.float32)

    out = dqn_forward(state, prepared)
    out = jax.block_until_ready(out)

    ref = reference_forward(state, params)
    assert out.shape == (batch, OUT_DIM)
    # bf16 weights + bf16 output store -> compare at ~1e-2 tolerance.
    assert jnp.allclose(out, ref, atol=2e-2, rtol=2e-2), (
        float(jnp.max(jnp.abs(out - ref))))

    # TODO(synk): torch.optim.Adam state/updates (training step) are not part
    # of the forward pass; not translated.
    print("KERNEL_OK")
</pallas_src>

<mosaic_0001>
module attributes {stable_mosaic.version = 11 : i64} {
  func.func @dqn_mlp_kernel(%arg0: i32, %arg1: memref<16x128xf32, #tpu.memory_space<vmem>>, %arg2: memref<128x128xbf16, #tpu.memory_space<vmem>>, %arg3: memref<1x128xf32, #tpu.memory_space<vmem>>, %arg4: memref<128x128xbf16, #tpu.memory_space<vmem>>, %arg5: memref<1x128xf32, #tpu.memory_space<vmem>>, %arg6: memref<128x256xbf16, #tpu.memory_space<vmem>>, %arg7: memref<1x256xf32, #tpu.memory_space<vmem>>, %arg8: memref<256x16xbf16, #tpu.memory_space<vmem>>, %arg9: memref<1x16xf32, #tpu.memory_space<vmem>>, %arg10: memref<16x16xbf16, #tpu.memory_space<vmem>>) attributes {dimension_semantics = [#tpu.dimension_semantics<parallel>], iteration_bounds = array<i64: 1>, scalar_prefetch = 0 : i64, scratch_operands = 0 : i64, tpu.core_type = #tpu.core_type<tc>, window_params = [{transform_indices = @transform_0, window_bounds = array<i64: 16, 128>}, {pipeline_mode = #tpu.pipeline_mode<synchronous>, transform_indices = @transform_1, window_bounds = array<i64: 128, 128>}, {pipeline_mode = #tpu.pipeline_mode<synchronous>, transform_indices = @transform_2, window_bounds = array<i64: 1, 128>}, {pipeline_mode = #tpu.pipeline_mode<synchronous>, transform_indices = @transform_3, window_bounds = array<i64: 128, 128>}, {pipeline_mode = #tpu.pipeline_mode<synchronous>, transform_indices = @transform_4, window_bounds = array<i64: 1, 128>}, {pipeline_mode = #tpu.pipeline_mode<synchronous>, transform_indices = @transform_5, window_bounds = array<i64: 128, 256>}, {pipeline_mode = #tpu.pipeline_mode<synchronous>, transform_indices = @transform_6, window_bounds = array<i64: 1, 256>}, {pipeline_mode = #tpu.pipeline_mode<synchronous>, transform_indices = @transform_7, window_bounds = array<i64: 256, 16>}, {pipeline_mode = #tpu.pipeline_mode<synchronous>, transform_indices = @transform_8, window_bounds = array<i64: 1, 16>}, {transform_indices = @transform_9, window_bounds = array<i64: 16, 16>}]} {
    %c0 = arith.constant 0 : index
    %c0_0 = arith.constant 0 : index
    %0 = vector.load %arg1[%c0, %c0_0] : memref<16x128xf32, #tpu.memory_space<vmem>>, vector<16x128xf32>
    %1 = arith.truncf %0 : vector<16x128xf32> to vector<16x128xbf16>
    %c0_1 = arith.constant 0 : index
    %c0_2 = arith.constant 0 : index
    %2 = vector.load %arg2[%c0_1, %c0_2] : memref<128x128xbf16, #tpu.memory_space<vmem>>, vector<128x128xbf16>
    %cst = arith.constant dense<0.000000e+00> : vector<16x128xf32>
    %3 = tpu.matmul %1, %2, %cst {dimension_numbers = #tpu.dot_dimension_numbers<[1], [0], [0], [1], [0, 0, 1, 1], [], []>} : vector<16x128xbf16>, vector<128x128xbf16>, vector<16x128xf32> -> vector<16x128xf32>
    %c0_3 = arith.constant 0 : index
    %c0_4 = arith.constant 0 : index
    %4 = vector.load %arg3[%c0_3, %c0_4] : memref<1x128xf32, #tpu.memory_space<vmem>>, vector<1x128xf32>
    %5 = vector.broadcast %4 : vector<1x128xf32> to vector<16x128xf32>
    %6 = arith.addf %3, %5 : vector<16x128xf32>
    %cst_5 = arith.constant 0.000000e+00 : f32
    %7 = vector.broadcast %cst_5 : f32 to vector<16x128xf32>
    %8 = arith.maximumf %6, %7 : vector<16x128xf32>
    %9 = arith.truncf %8 : vector<16x128xf32> to vector<16x128xbf16>
    %c0_6 = arith.constant 0 : index
    %c0_7 = arith.constant 0 : index
    %10 = vector.load %arg4[%c0_6, %c0_7] : memref<128x128xbf16, #tpu.memory_space<vmem>>, vector<128x128xbf16>
    %cst_8 = arith.constant dense<0.000000e+00> : vector<16x128xf32>
    %11 = tpu.matmul %9, %10, %cst_8 {dimension_numbers = #tpu.dot_dimension_numbers<[1], [0], [0], [1], [0, 0, 1, 1], [], []>} : vector<16x128xbf16>, vector<128x128xbf16>, vector<16x128xf32> -> vector<16x128xf32>
    %c0_9 = arith.constant 0 : index
    %c0_10 = arith.constant 0 : index
    %12 = vector.load %arg5[%c0_9, %c0_10] : memref<1x128xf32, #tpu.memory_space<vmem>>, vector<1x128xf32>
    %13 = vector.broadcast %12 : vector<1x128xf32> to vector<16x128xf32>
    %14 = arith.addf %11, %13 : vector<16x128xf32>
    %cst_11 = arith.constant 0.000000e+00 : f32
    %15 = vector.broadcast %cst_11 : f32 to vector<16x128xf32>
    %16 = arith.maximumf %14, %15 : vector<16x128xf32>
    %17 = arith.truncf %16 : vector<16x128xf32> to vector<16x128xbf16>
    %c0_12 = arith.constant 0 : index
    %c0_13 = arith.constant 0 : index
    %18 = vector.load %arg6[%c0_12, %c0_13] : memref<128x256xbf16, #tpu.memory_space<vmem>>, vector<128x256xbf16>
    %cst_14 = arith.constant dense<0.000000e+00> : vector<16x256xf32>
    %19 = tpu.matmul %17, %18, %cst_14 {dimension_numbers = #tpu.dot_dimension_numbers<[1], [0], [0], [1], [0, 0, 1, 1], [], []>} : vector<16x128xbf16>, vector<128x256xbf16>, vector<16x256xf32> -> vector<16x256xf32>
    %c0_15 = arith.constant 0 : index
    %c0_16 = arith.constant 0 : index
    %20 = vector.load %arg7[%c0_15, %c0_16] : memref<1x256xf32, #tpu.memory_space<vmem>>, vector<1x256xf32>
    %21 = vector.broadcast %20 : vector<1x256xf32> to vector<16x256xf32>
    %22 = arith.addf %19, %21 : vector<16x256xf32>
    %cst_17 = arith.constant 0.000000e+00 : f32
    %23 = vector.broadcast %cst_17 : f32 to vector<16x256xf32>
    %24 = arith.maximumf %22, %23 : vector<16x256xf32>
    %25 = arith.truncf %24 : vector<16x256xf32> to vector<16x256xbf16>
    %c0_18 = arith.constant 0 : index
    %c0_19 = arith.constant 0 : index
    %26 = vector.load %arg8[%c0_18, %c0_19] : memref<256x16xbf16, #tpu.memory_space<vmem>>, vector<256x16xbf16>
    %cst_20 = arith.constant dense<0.000000e+00> : vector<16x16xf32>
    %27 = tpu.matmul %25, %26, %cst_20 {dimension_numbers = #tpu.dot_dimension_numbers<[1], [0], [0], [1], [0, 0, 1, 1], [], []>} : vector<16x256xbf16>, vector<256x16xbf16>, vector<16x16xf32> -> vector<16x16xf32>
    %c0_21 = arith.constant 0 : index
    %c0_22 = arith.constant 0 : index
    %28 = vector.load %arg9[%c0_21, %c0_22] : memref<1x16xf32, #tpu.memory_space<vmem>>, vector<1x16xf32>
    %29 = vector.broadcast %28 : vector<1x16xf32> to vector<16x16xf32>
    %30 = arith.addf %27, %29 : vector<16x16xf32>
    %31 = arith.truncf %30 : vector<16x16xf32> to vector<16x16xbf16>
    %c0_23 = arith.constant 0 : index
    %c0_24 = arith.constant 0 : index
    %32 = vector.load %arg10[%c0_23, %c0_24] : memref<16x16xbf16, #tpu.memory_space<vmem>>, vector<16x16xbf16>
    tpu.vector_store %arg10[%c0_23, %c0_24], %31 {strides = array<i32>} : memref<16x16xbf16, #tpu.memory_space<vmem>>, vector<16x16xbf16>,
    return
  }
  func.func @transform_0(%arg0: i32) -> (i32, i32) {
    %c0_i32 = arith.constant 0 : i32
    %c0_i32_0 = arith.constant 0 : i32
    return %arg0, %c0_i32 : i32, i32
  }
  func.func @transform_1(%arg0: i32) -> (i32, i32) {
    %c0_i32 = arith.constant 0 : i32
    %c0_i32_0 = arith.constant 0 : i32
    %c0_i32_1 = arith.constant 0 : i32
    return %c0_i32, %c0_i32_0 : i32, i32
  }
  func.func @transform_2(%arg0: i32) -> (i32, i32) {
    %c0_i32 = arith.constant 0 : i32
    %c0_i32_0 = arith.constant 0 : i32
    %c0_i32_1 = arith.constant 0 : i32
    return %c0_i32, %c0_i32_0 : i32, i32
  }
  func.func @transform_3(%arg0: i32) -> (i32, i32) {
    %c0_i32 = arith.constant 0 : i32
    %c0_i32_0 = arith.constant 0 : i32
    %c0_i32_1 = arith.constant 0 : i32
    return %c0_i32, %c0_i32_0 : i32, i32
  }
  func.func @transform_4(%arg0: i32) -> (i32, i32) {
    %c0_i32 = arith.constant 0 : i32
    %c0_i32_0 = arith.constant 0 : i32
    %c0_i32_1 = arith.constant 0 : i32
    return %c0_i32, %c0_i32_0 : i32, i32
  }
  func.func @transform_5(%arg0: i32) -> (i32, i32) {
    %c0_i32 = arith.constant 0 : i32
    %c0_i32_0 = arith.constant 0 : i32
    %c0_i32_1 = arith.constant 0 : i32
    return %c0_i32, %c0_i32_0 : i32, i32
  }
  func.func @transform_6(%arg0: i32) -> (i32, i32) {
    %c0_i32 = arith.constant 0 : i32
    %c0_i32_0 = arith.constant 0 : i32
    %c0_i32_1 = arith.constant 0 : i32
    return %c0_i32, %c0_i32_0 : i32, i32
  }
  func.func @transform_7(%arg0: i32) -> (i32, i32) {
    %c0_i32 = arith.constant 0 : i32
    %c0_i32_0 = arith.constant 0 : i32
    %c0_i32_1 = arith.constant 0 : i32
    return %c0_i32, %c0_i32_0 : i32, i32
  }
  func.func @transform_8(%arg0: i32) -> (i32, i32) {
    %c0_i32 = arith.constant 0 : i32
    %c0_i32_0 = arith.constant 0 : i32
    %c0_i32_1 = arith.constant 0 : i32
    return %c0_i32, %c0_i32_0 : i32, i32
  }
  func.func @transform_9(%arg0: i32) -> (i32, i32) {
    %c0_i32 = arith.constant 0 : i32
    %c0_i32_0 = arith.constant 0 : i32
    return %arg0, %c0_i32 : i32, i32
  }
}

</mosaic_0001>

<llo_original>
// kernel: tpu_custom_call.1
$region0: #{tpu_custom_call.1}
  #allocation0 [shape = 'u32[]', space=smem, size = 0x4, offset = 0x4, fixed_abs, tag = 'smem constant byte address 0x4 - core index']
  #allocation1 [shape = 'u32[72,128]{1,0:T(1,128)}', space=vmem, size = 0x9000, scoped, tag = 'internal scratch']
  %s0 = inlined_call_operand.vmem [shape: f32[16,128], index: 0, kind: input, shape index: {}]
  %s1 = inlined_call_operand.hbm [shape: bf16[128,128], index: 1, kind: input, shape index: {}]
  %s2 = inlined_call_operand.vmem [shape: f32[1,128], index: 2, kind: input, shape index: {}]
  %s3 = inlined_call_operand.hbm [shape: bf16[128,128], index: 3, kind: input, shape index: {}]
  %s4 = inlined_call_operand.vmem [shape: f32[1,128], index: 4, kind: input, shape index: {}]
  %s5 = inlined_call_operand.vmem [shape: bf16[128,256], index: 5, kind: input, shape index: {}]
  %s6 = inlined_call_operand.vmem [shape: f32[1,256], index: 6, kind: input, shape index: {}]
  %s7 = inlined_call_operand.vmem [shape: bf16[256,16], index: 7, kind: input, shape index: {}]
  %s8 = inlined_call_operand.vmem [shape: f32[1,16], index: 8, kind: input, shape index: {}]
  %s9 = inlined_call_operand.hbm [shape: bf16[16,16], index: 9, kind: output, shape index: {}]
  %s10 = sld [smem:[#allocation0]]
  $region54: #{tpu_custom_call.1} parent=0
    _
  %s12 = ssub.s32 1, %s10
  %s13 = scalar_select 0, %s12, %s10
  $region1: #{tpu_custom_call.1} parent=0
    #allocation2 [shape = 'u8[32768]{0}', space=vmem, size = 0x8000, scoped, tag = 'input window, operand 1, single buffered']
    #allocation3 [shape = 's32[1]{0}', space=sflag, size = 0x4, scoped, tag = 'scoped memory for tpu_custom_call.1']
    #allocation4 [shape = 's32[1]{0}', space=sflag, size = 0x4, scoped, tag = 'scoped memory for tpu_custom_call.1']
    #allocation5 [shape = 'u8[32768]{0}', space=vmem, size = 0x8000, scoped, tag = 'input window, operand 3, single buffered']
    #allocation6 [shape = 's32[1]{0}', space=sflag, size = 0x4, scoped, tag = 'scoped memory for tpu_custom_call.1']
    #allocation7 [shape = 'u8[4096]{0}', space=vmem, size = 0x1000, scoped, tag = 'output window, operand 0, single buffered']
    %14 = vsyncpa [#allocation3], 0
    %15 = vsyncpa [#allocation6], 0
    %16 = vsyncpa [#allocation4], 0
    // Predicated region
    $region2: #{tpu_custom_call.1} parent=1 // pred_check
      _
    $region3: #{tpu_custom_call.1} parent=1 // pred_check_branch
      %18 = sbr.rel (0) target = $region5
    $region4: #{tpu_custom_call.1} parent=1 // pred_region
      _
    $region5: #{tpu_custom_call.1} parent=1 // pred_fallthru
      _
    // Predicated region
    $region6: #{tpu_custom_call.1} parent=1 // pred_check
      _
    $region7: #{tpu_custom_call.1} parent=1 // pred_check_branch
      %20 = sbr.rel (0) target = $region9
    $region8: #{tpu_custom_call.1} parent=1 // pred_region
      %22 = vsyncadd [#allocation3], 0
      %s23 = sshll.u32 %s1, 4
      %s24 = int_to_ptr.hbm [resolvable:$true] %s23
      %s25 = sshll.u32 [#allocation2], 4
      %s26 = int_to_ptr.vmem [resolvable:$true] %s25
      %31 = dma.hbm_to_vmem [thread:$0]  %s24, 1024, %s26, [#allocation3], 64, 64, 4
    $region9: #{tpu_custom_call.1} parent=1 // pred_fallthru
      _
    // Predicated region
    $region10: #{tpu_custom_call.1} parent=1 // pred_check
      _
    $region11: #{tpu_custom_call.1} parent=1 // pred_check_branch
      %33 = sbr.rel (0) target = $region13
    $region12: #{tpu_custom_call.1} parent=1 // pred_region
      _
    $region13: #{tpu_custom_call.1} parent=1 // pred_fallthru
      _
    // Predicated region
    $region14: #{tpu_custom_call.1} parent=1 // pred_check
      _
    $region15: #{tpu_custom_call.1} parent=1 // pred_check_branch
      %35 = sbr.rel (0) target = $region17
    $region16: #{tpu_custom_call.1} parent=1 // pred_region
      %37 = vsyncadd [#allocation6], 0
      %s38 = sshll.u32 %s3, 4
      %s39 = int_to_ptr.hbm [resolvable:$true] %s38
      %s40 = sshll.u32 [#allocation5], 4
      %s41 = int_to_ptr.vmem [resolvable:$true] %s40
      %46 = dma.hbm_to_vmem [thread:$0]  %s39, 1024, %s41, [#allocation6], 64, 64, 4
    $region17: #{tpu_custom_call.1} parent=1 // pred_fallthru
      _
    // Predicated region
    $region18: #{tpu_custom_call.1} parent=1 // pred_check
      _
    $region19: #{tpu_custom_call.1} parent=1 // pred_check_branch
      %48 = sbr.rel (0) target = $region21
    $region20: #{tpu_custom_call.1} parent=1 // pred_region
      _
    $region21: #{tpu_custom_call.1} parent=1 // pred_fallthru
      _
    // Predicated region
    $region22: #{tpu_custom_call.1} parent=1 // pred_check
      _
    $region23: #{tpu_custom_call.1} parent=1 // pred_check_branch
      %50 = sbr.rel (0) target = $region25
    $region24: #{tpu_custom_call.1} parent=1 // pred_region
      _
    $region25: #{tpu_custom_call.1} parent=1 // pred_fallthru
      _
    // Predicated region
    $region26: #{tpu_custom_call.1} parent=1 // pred_check
      _
    $region27: #{tpu_custom_call.1} parent=1 // pred_check_branch
      %52 = sbr.rel (0) target = $region29
    $region28: #{tpu_custom_call.1} parent=1 // pred_region
      _
    $region29: #{tpu_custom_call.1} parent=1 // pred_fallthru
      _
    // Predicated region
    $region30: #{tpu_custom_call.1} parent=1 // pred_check
      _
    $region31: #{tpu_custom_call.1} parent=1 // pred_check_branch
      %54 = sbr.rel (0) target = $region33
    $region32: #{tpu_custom_call.1} parent=1 // pred_region
      _
    $region33: #{tpu_custom_call.1} parent=1 // pred_fallthru
      _
    // Predicated region
    $region34: #{tpu_custom_call.1} parent=1 // pred_check
      _
    $region35: #{tpu_custom_call.1} parent=1 // pred_check_branch
      %56 = sbr.rel (0) target = $region37
    $region36: #{tpu_custom_call.1} parent=1 // pred_region
      _
    $region37: #{tpu_custom_call.1} parent=1 // pred_fallthru
      _
    // Predicated region
    $region38: #{tpu_custom_call.1} parent=1 // pred_check
      _
    $region39: #{tpu_custom_call.1} parent=1 // pred_check_branch
      %58 = sbr.rel (0) target = $region41
    $region40: #{tpu_custom_call.1} parent=1 // pred_region
      %60 = dma.done [#allocation3], 1024
    $region41: #{tpu_custom_call.1} parent=1 // pred_fallthru
      _
    // Predicated region
    $region42: #{tpu_custom_call.1} parent=1 // pred_check
      _
    $region43: #{tpu_custom_call.1} parent=1 // pred_check_branch
      %62 = sbr.rel (0) target = $region45
    $region44: #{tpu_custom_call.1} parent=1 // pred_region
      %64 = dma.done [#allocation6], 1024
    $region45: #{tpu_custom_call.1} parent=1 // pred_fallthru
      _
    %v65 = vld [vmem:[%s0] sm:$0xff]
    %v66 = vld [vmem:[%s0 + $0x8] sm:$0xff]
    %v67 = vpack.c.bf16 %v66, %v65
    %v68 = vld [vmem:[#allocation2] sm:$0xf]
    %v69 = vld [vmem:[#allocation2 + $0x4] sm:$0xf]
    %v70 = vld [vmem:[#allocation2 + $0x8] sm:$0xf]
    %v71 = vld [vmem:[#allocation2 + $0xc] sm:$0xf]
    %v72 = vld [vmem:[#allocation2 + $0x10] sm:$0xf]
    %v73 = vld [vmem:[#allocation2 + $0x14] sm:$0xf]
    %v74 = vld [vmem:[#allocation2 + $0x18] sm:$0xf]
    %v75 = vld [vmem:[#allocation2 + $0x1c] sm:$0xf]
    %v76 = vld [vmem:[#allocation2 + $0x20] sm:$0xf]
    %v77 = vld [vmem:[#allocation2 + $0x24] sm:$0xf]
    %v78 = vld [vmem:[#allocation2 + $0x28] sm:$0xf]
    %v79 = vld [vmem:[#allocation2 + $0x2c] sm:$0xf]
    %v80 = vld [vmem:[#allocation2 + $0x30] sm:$0xf]
    %v81 = vld [vmem:[#allocation2 + $0x34] sm:$0xf]
    %v82 = vld [vmem:[#allocation2 + $0x38] sm:$0xf]
    %v83 = vld [vmem:[#allocation2 + $0x3c] sm:$0xf]
    %v84 = vld [vmem:[%s2] sm:$0x1]
    %v86 = vperm.slane %v84, 0
    %v104 = vunpack.c.l.b16 %v68
    %v105 = vunpack.c.l.b16 %v69
    %v106 = vunpack.c.l.b16 %v70
    %v107 = vunpack.c.l.b16 %v71
    %v108 = vunpack.c.l.b16 %v72
    %v109 = vunpack.c.l.b16 %v73
    %v110 = vunpack.c.l.b16 %v74
    %v111 = vunpack.c.l.b16 %v75
    %v112 = vunpack.c.l.b16 %v76
    %v113 = vunpack.c.l.b16 %v77
    %v114 = vunpack.c.l.b16 %v78
    %v115 = vunpack.c.l.b16 %v79
    %v116 = vunpack.c.l.b16 %v80
    %v117 = vunpack.c.l.b16 %v81
    %v118 = vunpack.c.l.b16 %v82
    %v119 = vunpack.c.l.b16 %v83
    %v120 = vpack.c.b16 %v105, %v104
    %v121 = vpack.c.b16 %v107, %v106
    %v122 = vpack.c.b16 %v109, %v108
    %v123 = vpack.c.b16 %v111, %v110
    %v124 = vpack.c.b16 %v113, %v112
    %v125 = vpack.c.b16 %v115, %v114
    %v126 = vpack.c.b16 %v117, %v116
    %v127 = vpack.c.b16 %v119, %v118
    %136 = vmatpush.bf16.msra.mxu0 %v127
    %137 = vmatpush.bf16.msra.mxu0 %v126
    %138 = vmatpush.bf16.msra.mxu0 %v125
    %139 = vmatpush.bf16.msra.mxu0 %v124
    %140 = vmatpush.bf16.msra.mxu0 %v123
    %141 = vmatpush.bf16.msra.mxu0 %v122
    %142 = vmatpush.bf16.msra.mxu0 %v121
    %143 = vmatpush.bf16.msra.mxu0 %v120
    %144 = vmatmul.bf16.gmra.mxu0 %v67
    %v145 = vpop.f32.mrf.mxu0
    %v146 = vadd.f32 %v86, %v145
    %v147 = vpop.f32.mrf.mxu0
    %v148 = vadd.f32 %v86, %v147
    %149 = vdwg.mxu0
    %v150 = vmax.f32 %v146, 0.0
    %v151 = vmax.f32 %v148, 0.0
    %v152 = vpack.c.bf16 %v151, %v150
    %v153 = vld [vmem:[#allocation5] sm:$0xf]
    %v154 = vld [vmem:[#allocation5 + $0x4] sm:$0xf]
    %v155 = vld [vmem:[#allocation5 + $0x8] sm:$0xf]
    %v156 = vld [vmem:[#allocation5 + $0xc] sm:$0xf]
    %v157 = vld [vmem:[#allocation5 + $0x10] sm:$0xf]
    %v158 = vld [vmem:[#allocation5 + $0x14] sm:$0xf]
    %v159 = vld [vmem:[#allocation5 + $0x18] sm:$0xf]
    %v160 = vld [vmem:[#allocation5 + $0x1c] sm:$0xf]
    %v161 = vld [vmem:[#allocation5 + $0x20] sm:$0xf]
    %v162 = vld [vmem:[#allocation5 + $0x24] sm:$0xf]
    %v163 = vld [vmem:[#allocation5 + $0x28] sm:$0xf]
    %v164 = vld [vmem:[#allocation5 + $0x2c] sm:$0xf]
    %v165 = vld [vmem:[#allocation5 + $0x30] sm:$0xf]
    %v166 = vld [vmem:[#allocation5 + $0x34] sm:$0xf]
    %v167 = vld [vmem:[#allocation5 + $0x38] sm:$0xf]
    %v168 = vld [vmem:[#allocation5 + $0x3c] sm:$0xf]
    %v169 = vld [vmem:[%s4] sm:$0x1]
    %v171 = vperm.slane %v169, 0
    %v189 = vunpack.c.l.b16 %v153
    %v190 = vunpack.c.l.b16 %v154
    %v191 = vunpack.c.l.b16 %v155
    %v192 = vunpack.c.l.b16 %v156
    %v193 = vunpack.c.l.b16 %v157
    %v194 = vunpack.c.l.b16 %v158
    %v195 = vunpack.c.l.b16 %v159
    %v196 = vunpack.c.l.b16 %v160
    %v197 = vunpack.c.l.b16 %v161
    %v198 = vunpack.c.l.b16 %v162
    %v199 = vunpack.c.l.b16 %v163
    %v200 = vunpack.c.l.b16 %v164
    %v201 = vunpack.c.l.b16 %v165
    %v202 = vunpack.c.l.b16 %v166
    %v203 = vunpack.c.l.b16 %v167
    %v204 = vunpack.c.l.b16 %v168
    %v205 = vpack.c.b16 %v190, %v189
    %v206 = vpack.c.b16 %v192, %v191
    %v207 = vpack.c.b16 %v194, %v193
    %v208 = vpack.c.b16 %v196, %v195
    %v209 = vpack.c.b16 %v198, %v197
    %v210 = vpack.c.b16 %v200, %v199
    %v211 = vpack.c.b16 %v202, %v201
    %v212 = vpack.c.b16 %v204, %v203
    %221 = vmatpush.bf16.msra.mxu0 %v212
    %222 = vmatpush.bf16.msra.mxu0 %v211
    %223 = vmatpush.bf16.msra.mxu0 %v210
    %224 = vmatpush.bf16.msra.mxu0 %v209
    %225 = vmatpush.bf16.msra.mxu0 %v208
    %226 = vmatpush.bf16.msra.mxu0 %v207
    %227 = vmatpush.bf16.msra.mxu0 %v206
    %228 = vmatpush.bf16.msra.mxu0 %v205
    %229 = vmatmul.bf16.gmra.mxu0 %v152
    %v230 = vpop.f32.mrf.mxu0
    %v231 = vadd.f32 %v171, %v230
    %v232 = vpop.f32.mrf.mxu0
    %v233 = vadd.f32 %v171, %v232
    %234 = vdwg.mxu0
    %v235 = vmax.f32 %v231, 0.0
    %v236 = vmax.f32 %v233, 0.0
    %v237 = vpack.c.bf16 %v236, %v235
    %v238 = vld [vmem:[%s5] sm:$0xff]
    %v239 = vld [vmem:[%s5 + $0x8] sm:$0xff]
    %v240 = vld [vmem:[%s5 + $0x10] sm:$0xff]
    %v241 = vld [vmem:[%s5 + $0x18] sm:$0xff]
    %v242 = vld [vmem:[%s5 + $0x20] sm:$0xff]
    %v243 = vld [vmem:[%s5 + $0x28] sm:$0xff]
    %v244 = vld [vmem:[%s5 + $0x30] sm:$0xff]
    %v245 = vld [vmem:[%s5 + $0x38] sm:$0xff]
    %v246 = vld [vmem:[%s5 + $0x40] sm:$0xff]
    %v247 = vld [vmem:[%s5 + $0x48] sm:$0xff]
    %v248 = vld [vmem:[%s5 + $0x50] sm:$0xff]
    %v249 = vld [vmem:[%s5 + $0x58] sm:$0xff]
    %v250 = vld [vmem:[%s5 + $0x60] sm:$0xff]
    %v251 = vld [vmem:[%s5 + $0x68] sm:$0xff]
    %v252 = vld [vmem:[%s5 + $0x70] sm:$0xff]
    %v253 = vld [vmem:[%s5 + $0x78] sm:$0xff]
    %v254 = vld [vmem:[%s6] sm:$0x3]
    %v256 = vperm.slane %v254, 0
    %v257 = vperm.slane %v254, 1
    %v276 = vunpack.c.l.b16 %v238
    %v277 = vunpack.c.h.b16 %v238
    %v278 = vunpack.c.l.b16 %v239
    %v279 = vunpack.c.h.b16 %v239
    %v280 = vunpack.c.l.b16 %v240
    %v281 = vunpack.c.h.b16 %v240
    %v282 = vunpack.c.l.b16 %v241
    %v283 = vunpack.c.h.b16 %v241
    %v284 = vunpack.c.l.b16 %v242
    %v285 = vunpack.c.h.b16 %v242
    %v286 = vunpack.c.l.b16 %v243
    %v287 = vunpack.c.h.b16 %v243
    %v288 = vunpack.c.l.b16 %v244
    %v289 = vunpack.c.h.b16 %v244
    %v290 = vunpack.c.l.b16 %v245
    %v291 = vunpack.c.h.b16 %v245
    %v292 = vunpack.c.l.b16 %v246
    %v293 = vunpack.c.h.b16 %v246
    %v294 = vunpack.c.l.b16 %v247
    %v295 = vunpack.c.h.b16 %v247
    %v296 = vunpack.c.l.b16 %v248
    %v297 = vunpack.c.h.b16 %v248
    %v298 = vunpack.c.l.b16 %v249
    %v299 = vunpack.c.h.b16 %v249
    %v300 = vunpack.c.l.b16 %v250
    %v301 = vunpack.c.h.b16 %v250
    %v302 = vunpack.c.l.b16 %v251
    %v303 = vunpack.c.h.b16 %v251
    %v304 = vunpack.c.l.b16 %v252
    %v305 = vunpack.c.h.b16 %v252
    %v306 = vunpack.c.l.b16 %v253
    %v307 = vunpack.c.h.b16 %v253
    %v308 = vpack.c.b16 %v278, %v276
    %v309 = vpack.c.b16 %v279, %v277
    %v310 = vpack.c.b16 %v282, %v280
    %v311 = vpack.c.b16 %v283, %v281
    %v312 = vpack.c.b16 %v286, %v284
    %v313 = vpack.c.b16 %v287, %v285
    %v314 = vpack.c.b16 %v290, %v288
    %v315 = vpack.c.b16 %v291, %v289
    %v316 = vpack.c.b16 %v294, %v292
    %v317 = vpack.c.b16 %v295, %v293
    %v318 = vpack.c.b16 %v298, %v296
    %v319 = vpack.c.b16 %v299, %v297
    %v320 = vpack.c.b16 %v302, %v300
    %v321 = vpack.c.b16 %v303, %v301
    %v322 = vpack.c.b16 %v306, %v304
    %v323 = vpack.c.b16 %v307, %v305
    %340 = vmatpush.bf16.msra.mxu0 %v322
    %341 = vmatpush.bf16.msra.mxu0 %v320
    %342 = vmatpush.bf16.msra.mxu0 %v318
    %343 = vmatpush.bf16.msra.mxu0 %v316
    %344 = vmatpush.bf16.msra.mxu0 %v314
    %345 = vmatpush.bf16.msra.mxu0 %v312
    %346 = vmatpush.bf16.msra.mxu0 %v310
    %347 = vmatpush.bf16.msra.mxu0 %v308
    %348 = vmatmul.bf16.gmra.mxu0 %v237
    %v349 = vpop.f32.mrf.mxu0
    %v350 = vadd.f32 %v256, %v349
    %v351 = vpop.f32.mrf.mxu0
    %v352 = vadd.f32 %v256, %v351
    %353 = vdwg.mxu0
    %354 = vmatpush.bf16.msra.mxu0 %v323
    %355 = vmatpush.bf16.msra.mxu0 %v321
    %356 = vmatpush.bf16.msra.mxu0 %v319
    %357 = vmatpush.bf16.msra.mxu0 %v317
    %358 = vmatpush.bf16.msra.mxu0 %v315
    %359 = vmatpush.bf16.msra.mxu0 %v313
    %360 = vmatpush.bf16.msra.mxu0 %v311
    %361 = vmatpush.bf16.msra.mxu0 %v309
    %362 = vmatmul.bf16.gmra.mxu0 %v237
    %v363 = vpop.f32.mrf.mxu0
    %v364 = vadd.f32 %v257, %v363
    %v365 = vpop.f32.mrf.mxu0
    %v366 = vadd.f32 %v257, %v365
    %367 = vdwg.mxu0
    %v368 = vmax.f32 %v350, 0.0
    %v369 = vmax.f32 %v364, 0.0
    %v370 = vmax.f32 %v352, 0.0
    %v371 = vmax.f32 %v366, 0.0
    %v372 = vpack.c.bf16 %v370, %v368
    %v373 = vpack.c.bf16 %v371, %v369
    %v374 = vld [vmem:[%s7] sm:$0xf]
    %v375 = vld [vmem:[%s7 + $0x4] sm:$0xf]
    %v376 = vld [vmem:[%s7 + $0x8] sm:$0xf]
    %v377 = vld [vmem:[%s7 + $0xc] sm:$0xf]
    %v378 = vld [vmem:[%s7 + $0x10] sm:$0xf]
    %v379 = vld [vmem:[%s7 + $0x14] sm:$0xf]
    %v380 = vld [vmem:[%s7 + $0x18] sm:$0xf]
    %v381 = vld [vmem:[%s7 + $0x1c] sm:$0xf]
    %v382 = vld [vmem:[%s7 + $0x20] sm:$0xf]
    %v383 = vld [vmem:[%s7 + $0x24] sm:$0xf]
    %v384 = vld [vmem:[%s7 + $0x28] sm:$0xf]
    %v385 = vld [vmem:[%s7 + $0x2c] sm:$0xf]
    %v386 = vld [vmem:[%s7 + $0x30] sm:$0xf]
    %v387 = vld [vmem:[%s7 + $0x34] sm:$0xf]
    %v388 = vld [vmem:[%s7 + $0x38] sm:$0xf]
    %v389 = vld [vmem:[%s7 + $0x3c] sm:$0xf]
    %v390 = vld [vmem:[%s7 + $0x40] sm:$0xf]
    %v391 = vld [vmem:[%s7 + $0x44] sm:$0xf]
    %v392 = vld [vmem:[%s7 + $0x48] sm:$0xf]
    %v393 = vld [vmem:[%s7 + $0x4c] sm:$0xf]
    %v394 = vld [vmem:[%s7 + $0x50] sm:$0xf]
    %v395 = vld [vmem:[%s7 + $0x54] sm:$0xf]
    %v396 = vld [vmem:[%s7 + $0x58] sm:$0xf]
    %v397 = vld [vmem:[%s7 + $0x5c] sm:$0xf]
    %v398 = vld [vmem:[%s7 + $0x60] sm:$0xf]
    %v399 = vld [vmem:[%s7 + $0x64] sm:$0xf]
    %v400 = vld [vmem:[%s7 + $0x68] sm:$0xf]
    %v401 = vld [vmem:[%s7 + $0x6c] sm:$0xf]
    %v402 = vld [vmem:[%s7 + $0x70] sm:$0xf]
    %v403 = vld [vmem:[%s7 + $0x74] sm:$0xf]
    %v404 = vld [vmem:[%s7 + $0x78] sm:$0xf]
    %v405 = vld [vmem:[%s7 + $0x7c] sm:$0xf]
    %v406 = vld [vmem:[%s8] sm:$0x1]
    %v408 = vperm.slane %v406, 0
    %v442 = vunpack.c.l.b16 %v374
    %v443 = vunpack.c.l.b16 %v375
    %v444 = vunpack.c.l.b16 %v376
    %v445 = vunpack.c.l.b16 %v377
    %v446 = vunpack.c.l.b16 %v378
    %v447 = vunpack.c.l.b16 %v379
    %v448 = vunpack.c.l.b16 %v380
    %v449 = vunpack.c.l.b16 %v381
    %v450 = vunpack.c.l.b16 %v382
    %v451 = vunpack.c.l.b16 %v383
    %v452 = vunpack.c.l.b16 %v384
    %v453 = vunpack.c.l.b16 %v385
    %v454 = vunpack.c.l.b16 %v386
    %v455 = vunpack.c.l.b16 %v387
    %v456 = vunpack.c.l.b16 %v388
    %v457 = vunpack.c.l.b16 %v389
    %v458 = vunpack.c.l.b16 %v390
    %v459 = vunpack.c.l.b16 %v391
    %v460 = vunpack.c.l.b16 %v392
    %v461 = vunpack.c.l.b16 %v393
    %v462 = vunpack.c.l.b16 %v394
    %v463 = vunpack.c.l.b16 %v395
    %v464 = vunpack.c.l.b16 %v396
    %v465 = vunpack.c.l.b16 %v397
    %v466 = vunpack.c.l.b16 %v398
    %v467 = vunpack.c.l.b16 %v399
    %v468 = vunpack.c.l.b16 %v400
    %v469 = vunpack.c.l.b16 %v401
    %v470 = vunpack.c.l.b16 %v402
    %v471 = vunpack.c.l.b16 %v403
    %v472 = vunpack.c.l.b16 %v404
    %v473 = vunpack.c.l.b16 %v405
    %v474 = vpack.c.b16 %v443, %v442
    %v475 = vpack.c.b16 %v445, %v444
    %v476 = vpack.c.b16 %v447, %v446
    %v477 = vpack.c.b16 %v449, %v448
    %v478 = vpack.c.b16 %v451, %v450
    %v479 = vpack.c.b16 %v453, %v452
    %v480 = vpack.c.b16 %v455, %v454
    %v481 = vpack.c.b16 %v457, %v456
    %v482 = vpack.c.b16 %v459, %v458
    %v483 = vpack.c.b16 %v461, %v460
    %v484 = vpack.c.b16 %v463, %v462
    %v485 = vpack.c.b16 %v465, %v464
    %v486 = vpack.c.b16 %v467, %v466
    %v487 = vpack.c.b16 %v469, %v468
    %v488 = vpack.c.b16 %v471, %v470
    %v489 = vpack.c.b16 %v473, %v472
    %506 = vmatpush.bf16.msra.mxu0 %v481
    %507 = vmatpush.bf16.msra.mxu0 %v480
    %508 = vmatpush.bf16.msra.mxu0 %v479
    %509 = vmatpush.bf16.msra.mxu0 %v478
    %510 = vmatpush.bf16.msra.mxu0 %v477
    %511 = vmatpush.bf16.msra.mxu0 %v476
    %512 = vmatpush.bf16.msra.mxu0 %v475
    %513 = vmatpush.bf16.msra.mxu0 %v474
    %514 = vmatmul.bf16.gmra.mxu0 %v372
    %v515 = vpop.f32.mrf.mxu0
    %v516 = vadd.f32 %v408, %v515
    %v517 = vpop.f32.mrf.mxu0
    %v518 = vadd.f32 %v408, %v517
    %519 = vdwg.mxu0
    %520 = vmatpush.bf16.msra.mxu0 %v489
    %521 = vmatpush.bf16.msra.mxu0 %v488
    %522 = vmatpush.bf16.msra.mxu0 %v487
    %523 = vmatpush.bf16.msra.mxu0 %v486
    %524 = vmatpush.bf16.msra.mxu0 %v485
    %525 = vmatpush.bf16.msra.mxu0 %v484
    %526 = vmatpush.bf16.msra.mxu0 %v483
    %527 = vmatpush.bf16.msra.mxu0 %v482
    %528 = vmatmul.bf16.gmra.mxu0 %v373
    %v529 = vpop.f32.mrf.mxu0
    %v530 = vadd.f32 %v516, %v529
    %v531 = vpop.f32.mrf.mxu0
    %v532 = vadd.f32 %v518, %v531
    %533 = vdwg.mxu0
    %v534 = vpack.c.bf16 %v530, %v530
    %v535 = vpack.c.bf16 %v532, %v532
    %vm536 = vcmask 125952
    %537 = vst.msk [vmem:[#allocation7] sm:$0xf] %vm536, %v534
    %538 = vst.msk [vmem:[#allocation7 + $0x4] sm:$0xf] %vm536, %v535
    // Predicated region
    $region46: #{tpu_custom_call.1} parent=1 // pred_check
      _
    $region47: #{tpu_custom_call.1} parent=1 // pred_check_branch
      %540 = sbr.rel (0) target = $region49
    $region48: #{tpu_custom_call.1} parent=1 // pred_region
      %542 = vsyncadd [#allocation4], 0
      %s543 = sshll.u32 [#allocation7], 4
      %s544 = int_to_ptr.vmem [resolvable:$true] %s543
      %s545 = sshll.u32 %s9, 4
      %s546 = int_to_ptr.hbm [resolvable:$true] %s545
      %551 = dma.vmem_to_hbm [thread:$0]  %s544, 128, %s546, [#allocation4], 64, 64, 4
    $region49: #{tpu_custom_call.1} parent=1 // pred_fallthru
      _
    // Predicated region
    $region50: #{tpu_custom_call.1} parent=1 // pred_check
      _
    $region51: #{tpu_custom_call.1} parent=1 // pred_check_branch
      %553 = sbr.rel (0) target = $region53
    $region52: #{tpu_custom_call.1} parent=1 // pred_region
      %555 = dma.done [#allocation4], 128
    $region53: #{tpu_custom_call.1} parent=1 // pred_fallthru
      _
    %556 = vsyncpa [#allocation3], 1
    %557 = vsyncpa [#allocation6], 1
    %558 = vsyncpa [#allocation4], 1

</llo_original>
